<compile_context>
chip_gen: v6e
topology: v6e:2x2x1
jax: 0.10.0
libtpu: 0.0.40
codegen_flags: <defaults>
</compile_context>

<pallas_src>
import functools

import jax
import jax.numpy as jnp
from jax.experimental import pallas as pl
from jax.experimental.pallas import tpu as pltpu

LANES = 128
SUBLANES = 8
CHUNK = SUBLANES * LANES          # wrapper guarantees kernel-slab rows % 8 == 0
TARGET_BLOCK_BYTES = 4 << 20      # ~4 MiB per input per grid step (dtype-aware rows)
VMEM_SLACK_BYTES = 8 << 20        # headroom for Mosaic temporaries / output blocks


def _partial_sq_err_kernel(p_ref, t_ref, out_ref, *, block_rows, valid_rows):
    """Write this block's partial sum of (p - t)^2, folded to an (8,128) tile.

    Every grid step writes its own output block -> no cross-step state, so the
    grid axis can be marked "parallel" (shards across both TensorCores on v7x).
    """
    # Cast to f32 inside the kernel (inputs arrive in their native dtype).
    d = p_ref[...].astype(jnp.float32) - t_ref[...].astype(jnp.float32)

    if valid_rows is not None:  # static: only emitted when the last block is partial
        i = pl.program_id(0)
        row = jax.lax.broadcasted_iota(jnp.int32, (block_rows, LANES), 0)
        # Select-based mask: padded rows of the last block may hold garbage
        # (possibly NaN); where() discards them before squaring.
        d = jnp.where(i * block_rows + row < valid_rows, d, 0.0)

    dsq = d * d
    # Fold (block_rows, 128) -> (8, 128): tile-aligned reshape (splits the
    # sublane dim on an 8-boundary, no relayout) + adds of aligned vregs
    # (pure VPU). The single cross-lane reduce happens once, in the wrapper.
    out_ref[0] = dsq.reshape(block_rows // SUBLANES, SUBLANES, LANES).sum(axis=0)


def _choose_block_rows(rows, p_itemsize, t_itemsize):
    """Dtype-aware block rows: constant HBM bytes/step, >=2 blocks when possible."""
    min_is = min(p_itemsize, t_itemsize)
    max_is = max(p_itemsize, t_itemsize)
    # Narrower dtypes pack more rows per vreg -> keep rows a multiple of their packing
    # (8 for f32, 16 for bf16/f16, 32 for 8-bit).
    align = SUBLANES * max(1, 4 // min_is)
    if rows <= align:
        return rows                       # tiny input: single full-extent block
    # Rows such that the widest input moves ~TARGET_BLOCK_BYTES per step.
    target = TARGET_BLOCK_BYTES // (LANES * max_is)
    target = max(align, (target // align) * align)
    if target >= rows:
        # Would be a single block: split in two so v7x's second TensorCore has work.
        half = -(-rows // 2)
        return -(-half // align) * align
    return target


def _sq_err_sum(p2d, t2d):
    """sum((p - t)^2) over a (rows, 128) slab with rows % 8 == 0."""
    rows, cols = p2d.shape
    assert cols == LANES and rows % SUBLANES == 0

    p_is = p2d.dtype.itemsize
    t_is = t2d.dtype.itemsize
    block_rows = _choose_block_rows(rows, p_is, t_is)
    num_blocks = pl.cdiv(rows, block_rows)
    last_block_partial = (rows % block_rows) != 0

    kernel = functools.partial(
        _partial_sq_err_kernel,
        block_rows=block_rows,
        valid_rows=rows if last_block_partial else None,
    )

    # Explicit scoped-VMEM budget: 2 inputs x 2 pipeline buffers x block bytes
    # plus slack. Avoids relying on per-gen defaults (16 MiB v5e / 32 MiB
    # v6e-v7x) and leaves headroom under v7x's 64 MiB physical VMEM.
    block_bytes = block_rows * LANES * (p_is + t_is)
    vmem_limit = int(min(2 * block_bytes + VMEM_SLACK_BYTES, 56 << 20))

    partials = pl.pallas_call(
        kernel,
        out_shape=jax.ShapeDtypeStruct((num_blocks, SUBLANES, LANES), jnp.float32),
        grid_spec=pltpu.PrefetchScalarGridSpec(
            num_scalar_prefetch=0,
            grid=(num_blocks,),
            in_specs=[
                pl.BlockSpec((block_rows, LANES), lambda i: (i, 0)),
                pl.BlockSpec((block_rows, LANES), lambda i: (i, 0)),
            ],
            # Lane-dense per-block partials (last two dims = (8, 128)).
            out_specs=pl.BlockSpec((1, SUBLANES, LANES), lambda i: (i, 0, 0)),
        ),
        compiler_params=pltpu.CompilerParams(
            # Independent per-block outputs -> safe to shard across TCs (v7x).
            dimension_semantics=("parallel",),
            vmem_limit_bytes=vmem_limit,
        ),
    )(p2d, t2d)

    # Tiny final reduce over (num_blocks, 8, 128) partials.
    return jnp.sum(partials)


@functools.partial(jax.jit, static_argnames=("mode",))
def mse_loss(prediction, target, mode="mean"):
    """Pallas TPU equivalent of the PyTorch mse_loss module.

    mode == 'mean': mean((p - t)^2) over all elements
    mode == 'sum' : sum((p - t)^2) / len(prediction)   (len = batch dim size,
                     matching the PyTorch module's `loss /= len(prediction)`)
    """
    assert prediction.shape == target.shape
    n_total = prediction.size
    n_batch = prediction.shape[0]

    # Free reshapes; keep the native dtype (the f32 upcast happens in-kernel),
    # and never jnp.pad (which would materialize full HBM copies).
    flat_p = prediction.reshape(-1)
    flat_t = target.reshape(-1)

    rem = n_total % CHUNK          # static
    main_n = n_total - rem

    sq_sum = jnp.float32(0.0)
    if main_n:
        if rem:
            p2d = flat_p[:main_n].reshape(-1, LANES)
            t2d = flat_t[:main_n].reshape(-1, LANES)
        else:
            p2d = flat_p.reshape(-1, LANES)
            t2d = flat_t.reshape(-1, LANES)
        sq_sum = sq_sum + _sq_err_sum(p2d, t2d)
    if rem:
        # Sub-1024-element tail: cheaper in plain JAX than padding/copying.
        dt = flat_p[main_n:].astype(jnp.float32) - flat_t[main_n:].astype(jnp.float32)
        sq_sum = sq_sum + jnp.sum(dt * dt)

    if mode == "sum":
        return sq_sum / jnp.float32(n_batch)
    return sq_sum / jnp.float32(n_total)


if __name__ == "__main__":
    key = jax.random.PRNGKey(0)
    kp, kt, kp2, kt2, kp3, kt3 = jax.random.split(key, 6)

    # Primary NCHW-shaped inputs: batch=2, channels=4, spatial=16x16 (f32).
    pred = jax.random.normal(kp, (2, 4, 16, 16), dtype=jnp.float32)
    targ = jax.random.normal(kt, (2, 4, 16, 16), dtype=jnp.float32)

    loss_mean = jax.block_until_ready(mse_loss(pred, targ, mode="mean"))
    loss_sum = jax.block_until_ready(mse_loss(pred, targ, mode="sum"))

    ref_mean = jnp.mean((pred - targ) ** 2)
    ref_sum = jnp.sum((pred - targ) ** 2) / pred.shape[0]
    assert jnp.allclose(loss_mean, ref_mean, rtol=1e-5, atol=1e-5)
    assert jnp.allclose(loss_sum, ref_sum, rtol=1e-5, atol=1e-5)

    # bf16 inputs stay bf16 on the wire; the kernel upcasts internally.
    pred_bf = pred.astype(jnp.bfloat16)
    targ_bf = targ.astype(jnp.bfloat16)
    loss_bf = jax.block_until_ready(mse_loss(pred_bf, targ_bf, mode="mean"))
    ref_bf = jnp.mean(
        (pred_bf.astype(jnp.float32) - targ_bf.astype(jnp.float32)) ** 2)
    assert jnp.allclose(loss_bf, ref_bf, rtol=1e-5, atol=1e-5)

    # Unaligned element count (2*3*17*11 = 1122): kernel slab + plain-JAX tail.
    pred_u = jax.random.normal(kp2, (2, 3, 17, 11), dtype=jnp.float32)
    targ_u = jax.random.normal(kt2, (2, 3, 17, 11), dtype=jnp.float32)
    loss_u = jax.block_until_ready(mse_loss(pred_u, targ_u, mode="mean"))
    ref_u = jnp.mean((pred_u - targ_u) ** 2)
    assert jnp.allclose(loss_u, ref_u, rtol=1e-5, atol=1e-5)

    # 24-row slab (2*3*16*32 = 3072): exercises the 2-block split with a
    # masked partial last block (rows=24, block_rows=16).
    pred_p = jax.random.normal(kp3, (2, 3, 16, 32), dtype=jnp.float32)
    targ_p = jax.random.normal(kt3, (2, 3, 16, 32), dtype=jnp.float32)
    loss_p = jax.block_until_ready(mse_loss(pred_p, targ_p, mode="sum"))
    ref_p = jnp.sum((pred_p - targ_p) ** 2) / pred_p.shape[0]
    assert jnp.allclose(loss_p, ref_p, rtol=1e-5, atol=1e-5)

    print("KERNEL_OK")
</pallas_src>

<mosaic_0001>
module attributes {stable_mosaic.version = 11 : i64} {
  func.func @_partial_sq_err_kernel(%arg0: i32, %arg1: memref<8x128xf32, #tpu.memory_space<vmem>>, %arg2: memref<8x128xf32, #tpu.memory_space<vmem>>, %arg3: memref<1x8x128xf32, #tpu.memory_space<vmem>>) attributes {dimension_semantics = [#tpu.dimension_semantics<parallel>], iteration_bounds = array<i64: 2>, scalar_prefetch = 0 : i64, scratch_operands = 0 : i64, tpu.core_type = #tpu.core_type<tc>, window_params = [{transform_indices = @transform_0, window_bounds = array<i64: 8, 128>}, {transform_indices = @transform_1, window_bounds = array<i64: 8, 128>}, {transform_indices = @transform_2, window_bounds = array<i64: 1, 8, 128>}]} {
    %c0 = arith.constant 0 : index
    %c0_0 = arith.constant 0 : index
    %0 = vector.load %arg1[%c0, %c0_0] : memref<8x128xf32, #tpu.memory_space<vmem>>, vector<8x128xf32>
    %c0_1 = arith.constant 0 : index
    %c0_2 = arith.constant 0 : index
    %1 = vector.load %arg2[%c0_1, %c0_2] : memref<8x128xf32, #tpu.memory_space<vmem>>, vector<8x128xf32>
    %2 = arith.subf %0, %1 : vector<8x128xf32>
    %3 = arith.mulf %2, %2 : vector<8x128xf32>
    %4 = vector.shape_cast %3 : vector<8x128xf32> to vector<1x8x128xf32>
    %cst = arith.constant dense<0.000000e+00> : vector<8x128xf32>
    %5 = vector.multi_reduction <add>, %4, %cst [0] : vector<1x8x128xf32> to vector<8x128xf32>
    %c0_3 = arith.constant 0 : index
    %c0_4 = arith.constant 0 : index
    %c0_5 = arith.constant 0 : index
    %6 = vector.load %arg3[%c0_3, %c0_4, %c0_5] : memref<1x8x128xf32, #tpu.memory_space<vmem>>, vector<1x8x128xf32>
    %7 = vector.shape_cast %6 : vector<1x8x128xf32> to vector<8x128xf32>
    %8 = vector.shape_cast %5 : vector<8x128xf32> to vector<1x8x128xf32>
    tpu.vector_store %arg3[%c0_3, %c0_4, %c0_5], %8 {strides = array<i32>} : memref<1x8x128xf32, #tpu.memory_space<vmem>>, vector<1x8x128xf32>,
    return
  }
  func.func @transform_0(%arg0: i32) -> (i32, i32) {
    %c0_i32 = arith.constant 0 : i32
    %c0_i32_0 = arith.constant 0 : i32
    return %arg0, %c0_i32 : i32, i32
  }
  func.func @transform_1(%arg0: i32) -> (i32, i32) {
    %c0_i32 = arith.constant 0 : i32
    %c0_i32_0 = arith.constant 0 : i32
    return %arg0, %c0_i32 : i32, i32
  }
  func.func @transform_2(%arg0: i32) -> (i32, i32, i32) {
    %c0_i32 = arith.constant 0 : i32
    %c0_i32_0 = arith.constant 0 : i32
    %c0_i32_1 = arith.constant 0 : i32
    return %arg0, %c0_i32, %c0_i32_0 : i32, i32, i32
  }
}

</mosaic_0001>

<llo_original>
// kernel: mse_loss.1
$region0: #{mse_loss.1}
  #allocation0 [shape = 'u32[]', space=smem, size = 0x4, offset = 0x4, fixed_abs, tag = 'smem constant byte address 0x4 - core index']
  #allocation1 [shape = 'u32[144,128]{1,0:T(1,128)}', space=vmem, size = 0x12000, scoped, tag = 'internal scratch']
  %s0 = inlined_call_operand.vmem [shape: f32[16,128], index: 0, kind: input, shape index: {}]
  %s1 = inlined_call_operand.vmem [shape: f32[16,128], index: 1, kind: input, shape index: {}]
  %s2 = inlined_call_operand.vmem [shape: f32[2,8,128], index: 2, kind: output, shape index: {}]
  %s3 = sld [smem:[#allocation0]]
  $region41: #{mse_loss.1} parent=0
    _
  %s5 = ssub.s32 1, %s3
  %s6 = scalar_select 0, %s5, %s3
  loop: start=0, step=1, limit=4
  $region2: #{mse_loss.1} parent=0 // loop_pre_header
    _
  $region3: #{mse_loss.1} parent=0 // loop_header
    %s8 = sphi 0, %s12
    %p9 = scmp.ge.s32.totalorder %s8, 4
    %s18 = sphi 0, %s20
    %s21 = sphi 0, %s18
    %s22 = sphi 0, %s21
    %s38 = sphi 0, %s22
    %s44 = sphi 0, %s46
    %s47 = sphi 0, %s44
    %s48 = sphi 0, %s47
    %s64 = sphi 0, %s48
    %s70 = sphi 0, %s72
    %s73 = sphi 0, %s70
    %s74 = sphi 0, %s73
    %s90 = sphi 0, %s74
  $region4: #{mse_loss.1} parent=0 // loop_header_branch
    %11 = sbr.rel (%p9) target = $region8
  $region5: #{mse_loss.1} parent=0 // loop_body
    %s13 = ssub.s32 %s8, 1
    %s14 = ssub.s32 %s8, 2
    %s15 = sadd.s32 %s8, 1
    %s16 = ssub.s32 %s8, %s15
    %p17 = scmp.eq.s32.totalorder %s16, 0
    %s19 = sadd.s32 %s18, 1
    %s20 = scalar_select %p17, %s18, %s19
    %p23 = pneg %p17
    %p24 = scmp.eq.s32.totalorder %s8, 1
    %p25 = por %p23, %p24
    %p26 = scmp.ne.s32.totalorder %s18, %s21
    %p27 = scmp.eq.s32.totalorder %s8, 0
    %p28 = por %p26, %p27
    %p29 = scmp.ne.s32.totalorder %s18, %s21
    %p30 = scmp.eq.s32.totalorder %s13, 1
    %p31 = por %p29, %p30
    %p32 = scmp.ne.s32.totalorder %s21, %s22
    %p33 = scmp.eq.s32.totalorder %s13, 0
    %p34 = por %p32, %p33
    %p35 = scmp.ne.s32.totalorder %s21, %s22
    %p36 = scmp.eq.s32.totalorder %s14, 1
    %p37 = por %p35, %p36
    %p39 = scmp.ne.s32.totalorder %s22, %s38
    %p40 = scmp.eq.s32.totalorder %s14, 0
    %p41 = por %p39, %p40
    %s42 = ssub.s32 %s8, %s15
    %p43 = scmp.eq.s32.totalorder %s42, 0
    %s45 = sadd.s32 %s44, 1
    %s46 = scalar_select %p43, %s44, %s45
    %p49 = pneg %p43
    %p50 = scmp.eq.s32.totalorder %s8, 1
    %p51 = por %p49, %p50
    %p52 = scmp.ne.s32.totalorder %s44, %s47
    %p53 = scmp.eq.s32.totalorder %s8, 0
    %p54 = por %p52, %p53
    %p55 = scmp.ne.s32.totalorder %s44, %s47
    %p56 = scmp.eq.s32.totalorder %s13, 1
    %p57 = por %p55, %p56
    %p58 = scmp.ne.s32.totalorder %s47, %s48
    %p59 = scmp.eq.s32.totalorder %s13, 0
    %p60 = por %p58, %p59
    %p61 = scmp.ne.s32.totalorder %s47, %s48
    %p62 = scmp.eq.s32.totalorder %s14, 1
    %p63 = por %p61, %p62
    %p65 = scmp.ne.s32.totalorder %s48, %s64
    %p66 = scmp.eq.s32.totalorder %s14, 0
    %p67 = por %p65, %p66
    %s68 = ssub.s32 %s8, %s15
    %p69 = scmp.eq.s32.totalorder %s68, 0
    %s71 = sadd.s32 %s70, 1
    %s72 = scalar_select %p69, %s70, %s71
    %p75 = pneg %p69
    %p76 = scmp.eq.s32.totalorder %s8, 1
    %p77 = por %p75, %p76
    %p78 = scmp.ne.s32.totalorder %s70, %s73
    %p79 = scmp.eq.s32.totalorder %s8, 0
    %p80 = por %p78, %p79
    %p81 = scmp.ne.s32.totalorder %s70, %s73
    %p82 = scmp.eq.s32.totalorder %s13, 1
    %p83 = por %p81, %p82
    %p84 = scmp.ne.s32.totalorder %s73, %s74
    %p85 = scmp.eq.s32.totalorder %s13, 0
    %p86 = por %p84, %p85
    %p87 = scmp.ne.s32.totalorder %s73, %s74
    %p88 = scmp.eq.s32.totalorder %s14, 1
    %p89 = por %p87, %p88
    %p91 = scmp.ne.s32.totalorder %s74, %s90
    %p92 = scmp.eq.s32.totalorder %s14, 0
    %p93 = por %p91, %p92
    %p94 = scmp.le.s32.totalorder 1, %s8
    %p95 = scmp.lt.s32.totalorder %s8, 3
    %p96 = pnand %p94, %p95
    %p97 = pneg %p96
    // Predicated region
    $region9: #{mse_loss.1} parent=5 // pred_check
      _
    $region10: #{mse_loss.1} parent=5 // pred_check_branch
      %99 = sbr.rel (%p96) target = $region12
    $region11: #{mse_loss.1} parent=5 // pred_region
      %s100 = ssub.s32 %s8, 1
    $region12: #{mse_loss.1} parent=5 // pred_fallthru
      _
    %p101 = scmp.lt.s32.totalorder %s8, 2
    // Predicated region
    $region13: #{mse_loss.1} parent=5 // pred_check
      %p102 = pneg %p101
    $region14: #{mse_loss.1} parent=5 // pred_check_branch
      %104 = sbr.rel (%p102) target = $region16
    $region15: #{mse_loss.1} parent=5 // pred_region
      // Predicated region
      $region17: #{mse_loss.1} parent=15 // pred_check
        %p105 = pneg %p28
      $region18: #{mse_loss.1} parent=15 // pred_check_branch
        %107 = sbr.rel (%p105) target = $region20
      $region19: #{mse_loss.1} parent=15 // pred_region
        %p108 = scmp.lt.s32.totalorder %s8, 1
        %s109 = scalar_select %p108, %s8, 1
        %s110 = smul.addr %s109, 8
        %s111 = scalar_lea.vmem %s0, %s110
      $region20: #{mse_loss.1} parent=15 // pred_fallthru
        _
      // Predicated region
      $region21: #{mse_loss.1} parent=15 // pred_check
        %p112 = pneg %p54
      $region22: #{mse_loss.1} parent=15 // pred_check_branch
        %114 = sbr.rel (%p112) target = $region24
      $region23: #{mse_loss.1} parent=15 // pred_region
        %p115 = scmp.lt.s32.totalorder %s8, 1
        %s116 = scalar_select %p115, %s8, 1
        %s117 = smul.addr %s116, 8
        %s118 = scalar_lea.vmem %s1, %s117
      $region24: #{mse_loss.1} parent=15 // pred_fallthru
        _
    $region16: #{mse_loss.1} parent=5 // pred_fallthru
      _
    %p119 = scmp.le.s32.totalorder 1, %s8
    %p120 = scmp.lt.s32.totalorder %s8, 3
    %p121 = pnand %p119, %p120
    %p122 = pneg %p121
    // Predicated region
    $region25: #{mse_loss.1} parent=5 // pred_check
      _
    $region26: #{mse_loss.1} parent=5 // pred_check_branch
      %124 = sbr.rel (%p121) target = $region28
    $region27: #{mse_loss.1} parent=5 // pred_region
      %s125 = ssub.s32 %s8, 1
      %p126 = scmp.lt.s32.totalorder %s13, 1
      %s127 = scalar_select %p126, %s13, 1
      %s128 = smul.addr %s127, 8
      %s129 = scalar_lea.vmem %s0, %s128
      %p130 = pneg %p34
      %p131 = pneg %p31
      %p132 = scmp.lt.s32.totalorder %s13, 1
      %s133 = scalar_select %p132, %s13, 1
      %s134 = smul.addr %s133, 8
      %s135 = scalar_lea.vmem %s1, %s134
      %p136 = pneg %p60
      %p137 = pneg %p57
      %p138 = pneg %p86
      %p139 = pneg %p83
      %p140 = scmp.lt.s32.totalorder %s13, 1
      %s141 = scalar_select %p140, %s13, 1
      %s142 = smul.addr %s141, 8
      %s143 = scalar_lea.vmem %s2, %s142
      %p144 = scmp.lt.s32.totalorder %s13, 1
      %s145 = scalar_select %p144, %s13, 1
      %s146 = smul.addr %s145, 8
      %s147 = scalar_lea.vmem %s0, %s146
      %p148 = scmp.lt.s32.totalorder %s13, 1
      %s149 = scalar_select %p148, %s13, 1
      %s150 = smul.addr %s149, 8
      %s151 = scalar_lea.vmem %s1, %s150
      %p152 = scmp.lt.s32.totalorder %s13, 1
      %s153 = scalar_select %p152, %s13, 1
      %s154 = smul.addr %s153, 8
      %s155 = scalar_lea.vmem %s2, %s154
      %v156 = vld [vmem:[%s147] sm:$0xff]
      %v157 = vld [vmem:[%s151] sm:$0xff]
      %v158 = vsub.f32 %v156, %v157
      %v159 = vmul.f32 %v158, %v158
      %v160 = vadd.f32 %v159, 0.0
      %161 = vst [vmem:[%s155] sm:$0xff] %v160
      %p162 = scmp.lt.s32.totalorder %s13, 1
      %s163 = scalar_select %p162, %s13, 1
      %s164 = smul.addr %s163, 8
      %s165 = scalar_lea.vmem %s2, %s164
      // Predicated region
      $region29: #{mse_loss.1} parent=27 // pred_check
        %p166 = pneg %p83
      $region30: #{mse_loss.1} parent=27 // pred_check_branch
        %168 = sbr.rel (%p166) target = $region32
      $region31: #{mse_loss.1} parent=27 // pred_region
        _
      $region32: #{mse_loss.1} parent=27 // pred_fallthru
        _
    $region28: #{mse_loss.1} parent=5 // pred_fallthru
      _
    %p169 = scmp.le.s32.totalorder 2, %s8
    // Predicated region
    $region33: #{mse_loss.1} parent=5 // pred_check
      %p170 = pneg %p169
    $region34: #{mse_loss.1} parent=5 // pred_check_branch
      %172 = sbr.rel (%p170) target = $region36
    $region35: #{mse_loss.1} parent=5 // pred_region
      %s173 = ssub.s32 %s8, 2
      // Predicated region
      $region37: #{mse_loss.1} parent=35 // pred_check
        %p174 = pneg %p89
      $region38: #{mse_loss.1} parent=35 // pred_check_branch
        %176 = sbr.rel (%p174) target = $region40
      $region39: #{mse_loss.1} parent=35 // pred_region
        %p177 = scmp.lt.s32.totalorder %s14, 1
        %s178 = scalar_select %p177, %s14, 1
        %s179 = smul.addr %s178, 8
        %s180 = scalar_lea.vmem %s2, %s179
      $region40: #{mse_loss.1} parent=35 // pred_fallthru
        _
    $region36: #{mse_loss.1} parent=5 // pred_fallthru
      _
  $region6: #{mse_loss.1} parent=0 // loop_footer
    %s12 = sadd.s32 1, %s8
  $region7: #{mse_loss.1} parent=0 // loop_footer_branch
    %7 = sbr.rel target = $region3
  $region8: #{mse_loss.1} parent=0 // loop_exit
    _

</llo_original>
